<compile_context>
chip_gen: v5e
topology: v5e:2x2
jax: 0.10.0
libtpu: 0.0.40
codegen_flags: <defaults>
</compile_context>

<pallas_src>
import jax
import jax.numpy as jnp
from jax.experimental import pallas as pl
from jax.experimental.pallas import tpu as pltpu

# ---- small, deterministic config consistent with the module ----------------
FEAT_DIM = 39          # config.feat_dim   (MFCC-style feature dim)
GEN_HIDDEN = 32        # config.gen_hidden_size
PHN_SIZE = 10          # config.phn_size
BATCH = 2
SEQ_LEN = 8            # time steps


# ------------------------------- kernel -------------------------------------
def generator_kernel(x_ref, mask_ref, g_ref,
                     w_in_ref, b_in_ref,
                     w_h_ref, b_h_ref,
                     w_out_ref, b_out_ref,
                     logits_ref, idx_ref):
    # x:    (M, F)   with M = N*T rows on sublanes, features on lanes
    # mask: (M, 1)   0/1 float
    # g:    (M, P)   pre-generated Gumbel noise
    x = x_ref[...]

    h = jnp.dot(x, w_in_ref[...], preferred_element_type=jnp.float32) + b_in_ref[...]
    h = jnp.maximum(h, 0.0)

    h = jnp.dot(h, w_h_ref[...], preferred_element_type=jnp.float32) + b_h_ref[...]
    h = jnp.maximum(h, 0.0)

    logits = jnp.dot(h, w_out_ref[...], preferred_element_type=jnp.float32) + b_out_ref[...]

    mask = mask_ref[...]                       # (M, 1)
    logits = logits * mask                     # logits * mask.unsqueeze(2)
    logits_ref[...] = logits

    # Gumbel-max sample: idx = argmax(logits + g, axis=-1); first-max semantics
    # implemented with iota + masked min-reduce (robust Mosaic lowering).
    z = logits + g_ref[...]                    # (M, P)
    m = jnp.max(z, axis=-1, keepdims=True)     # (M, 1)
    ids = jax.lax.broadcasted_iota(jnp.int32, z.shape, 1)
    big = jnp.int32(z.shape[-1])
    idx = jnp.min(jnp.where(z == m, ids, big), axis=-1, keepdims=True)  # (M, 1)
    idx_ref[...] = idx * mask.astype(jnp.int32)    # idx * mask.long()


# ------------------------------ glue / wrapper -------------------------------
def make_params(key):
    k = jax.random.split(key, 6)
    s_in = 1.0 / jnp.sqrt(jnp.float32(FEAT_DIM))
    s_h = 1.0 / jnp.sqrt(jnp.float32(GEN_HIDDEN))
    return {
        'w_in':  jax.random.normal(k[0], (FEAT_DIM, GEN_HIDDEN), jnp.float32) * s_in,
        'b_in':  jax.random.normal(k[1], (1, GEN_HIDDEN), jnp.float32) * 0.1,
        'w_h':   jax.random.normal(k[2], (GEN_HIDDEN, GEN_HIDDEN), jnp.float32) * s_h,
        'b_h':   jax.random.normal(k[3], (1, GEN_HIDDEN), jnp.float32) * 0.1,
        'w_out': jax.random.normal(k[4], (GEN_HIDDEN, PHN_SIZE), jnp.float32) * s_h,
        'b_out': jax.random.normal(k[5], (1, PHN_SIZE), jnp.float32) * 0.1,
    }


@jax.jit
def generator_forward(x, mask, gumbel, params):
    N, T, F = x.shape
    M = N * T
    x2 = x.reshape(M, F)                                   # row-major, free
    mask2 = mask.reshape(M, 1).astype(jnp.float32)
    g2 = gumbel.reshape(M, PHN_SIZE)

    vmem = pltpu.MemorySpace.VMEM
    logits, idx = pl.pallas_call(
        generator_kernel,
        out_shape=(jax.ShapeDtypeStruct((M, PHN_SIZE), jnp.float32),
                   jax.ShapeDtypeStruct((M, 1), jnp.int32)),
        in_specs=[pl.BlockSpec(memory_space=vmem) for _ in range(9)],
        out_specs=(pl.BlockSpec(memory_space=vmem),
                   pl.BlockSpec(memory_space=vmem)),
    )(x2, mask2, g2,
      params['w_in'], params['b_in'],
      params['w_h'], params['b_h'],
      params['w_out'], params['b_out'])

    return logits.reshape(N, T, PHN_SIZE), idx.reshape(N, T)


# --------------------------- pure-JAX reference ------------------------------
def generator_reference(x, mask, gumbel, params):
    h = jnp.maximum(x @ params['w_in'] + params['b_in'][0], 0.0)
    h = jnp.maximum(h @ params['w_h'] + params['b_h'][0], 0.0)
    logits = h @ params['w_out'] + params['b_out'][0]
    logits = logits * mask[..., None]
    idx = jnp.argmax(logits + gumbel, axis=-1).astype(jnp.int32)
    idx = idx * mask.astype(jnp.int32)
    return logits, idx


if __name__ == "__main__":
    key = jax.random.PRNGKey(0)
    pkey, xkey, gkey = jax.random.split(key, 3)
    params = make_params(pkey)

    x = jax.random.normal(xkey, (BATCH, SEQ_LEN, FEAT_DIM), jnp.float32)

    # deterministic mask: sequence 0 is full length, sequence 1 has length 5
    lengths = jnp.array([SEQ_LEN, 5], dtype=jnp.int32)
    mask = (jnp.arange(SEQ_LEN)[None, :] < lengths[:, None]).astype(jnp.float32)

    # deterministic Gumbel noise (wrapper-side; see TODO above)
    u = jax.random.uniform(gkey, (BATCH, SEQ_LEN, PHN_SIZE), jnp.float32,
                           minval=1e-6, maxval=1.0 - 1e-6)
    gumbel = -jnp.log(-jnp.log(u))

    logits, idx = generator_forward(x, mask, gumbel, params)
    logits = jax.block_until_ready(logits)
    idx = jax.block_until_ready(idx)

    ref_logits, ref_idx = generator_reference(x, mask, gumbel, params)

    assert logits.shape == (BATCH, SEQ_LEN, PHN_SIZE), logits.shape
    assert idx.shape == (BATCH, SEQ_LEN), idx.shape
    assert jnp.allclose(logits, ref_logits, atol=1e-5, rtol=1e-5), (logits, ref_logits)
    assert jnp.array_equal(idx, ref_idx), (idx, ref_idx)
    print("KERNEL_OK")
</pallas_src>

<mosaic_0001>
module attributes {stable_mosaic.version = 11 : i64} {
  func.func @generator_kernel(%arg0: memref<16x39xf32, #tpu.memory_space<vmem>>, %arg1: memref<16x1xf32, #tpu.memory_space<vmem>>, %arg2: memref<16x10xf32, #tpu.memory_space<vmem>>, %arg3: memref<39x32xf32, #tpu.memory_space<vmem>>, %arg4: memref<1x32xf32, #tpu.memory_space<vmem>>, %arg5: memref<32x32xf32, #tpu.memory_space<vmem>>, %arg6: memref<1x32xf32, #tpu.memory_space<vmem>>, %arg7: memref<32x10xf32, #tpu.memory_space<vmem>>, %arg8: memref<1x10xf32, #tpu.memory_space<vmem>>, %arg9: memref<16x10xf32, #tpu.memory_space<vmem>>, %arg10: memref<16x1xi32, #tpu.memory_space<vmem>>) attributes {dimension_semantics = [], scalar_prefetch = 0 : i64, scratch_operands = 0 : i64, tpu.core_type = #tpu.core_type<tc>} {
    %c0 = arith.constant 0 : index
    %c0_0 = arith.constant 0 : index
    %0 = vector.load %arg0[%c0, %c0_0] : memref<16x39xf32, #tpu.memory_space<vmem>>, vector<16x39xf32>
    %c0_1 = arith.constant 0 : index
    %c0_2 = arith.constant 0 : index
    %1 = vector.load %arg3[%c0_1, %c0_2] : memref<39x32xf32, #tpu.memory_space<vmem>>, vector<39x32xf32>
    %cst = arith.constant dense<0.000000e+00> : vector<16x32xf32>
    %2 = tpu.matmul %0, %1, %cst {dimension_numbers = #tpu.dot_dimension_numbers<[1], [0], [0], [1], [0, 0, 1, 1], [], []>} : vector<16x39xf32>, vector<39x32xf32>, vector<16x32xf32> -> vector<16x32xf32>
    %c0_3 = arith.constant 0 : index
    %c0_4 = arith.constant 0 : index
    %3 = vector.load %arg4[%c0_3, %c0_4] : memref<1x32xf32, #tpu.memory_space<vmem>>, vector<1x32xf32>
    %4 = vector.broadcast %3 : vector<1x32xf32> to vector<16x32xf32>
    %5 = arith.addf %2, %4 : vector<16x32xf32>
    %cst_5 = arith.constant 0.000000e+00 : f32
    %6 = vector.broadcast %cst_5 : f32 to vector<16x32xf32>
    %7 = arith.maximumf %5, %6 : vector<16x32xf32>
    %c0_6 = arith.constant 0 : index
    %c0_7 = arith.constant 0 : index
    %8 = vector.load %arg5[%c0_6, %c0_7] : memref<32x32xf32, #tpu.memory_space<vmem>>, vector<32x32xf32>
    %cst_8 = arith.constant dense<0.000000e+00> : vector<16x32xf32>
    %9 = tpu.matmul %7, %8, %cst_8 {dimension_numbers = #tpu.dot_dimension_numbers<[1], [0], [0], [1], [0, 0, 1, 1], [], []>} : vector<16x32xf32>, vector<32x32xf32>, vector<16x32xf32> -> vector<16x32xf32>
    %c0_9 = arith.constant 0 : index
    %c0_10 = arith.constant 0 : index
    %10 = vector.load %arg6[%c0_9, %c0_10] : memref<1x32xf32, #tpu.memory_space<vmem>>, vector<1x32xf32>
    %11 = vector.broadcast %10 : vector<1x32xf32> to vector<16x32xf32>
    %12 = arith.addf %9, %11 : vector<16x32xf32>
    %cst_11 = arith.constant 0.000000e+00 : f32
    %13 = vector.broadcast %cst_11 : f32 to vector<16x32xf32>
    %14 = arith.maximumf %12, %13 : vector<16x32xf32>
    %c0_12 = arith.constant 0 : index
    %c0_13 = arith.constant 0 : index
    %15 = vector.load %arg7[%c0_12, %c0_13] : memref<32x10xf32, #tpu.memory_space<vmem>>, vector<32x10xf32>
    %cst_14 = arith.constant dense<0.000000e+00> : vector<16x10xf32>
    %16 = tpu.matmul %14, %15, %cst_14 {dimension_numbers = #tpu.dot_dimension_numbers<[1], [0], [0], [1], [0, 0, 1, 1], [], []>} : vector<16x32xf32>, vector<32x10xf32>, vector<16x10xf32> -> vector<16x10xf32>
    %c0_15 = arith.constant 0 : index
    %c0_16 = arith.constant 0 : index
    %17 = vector.load %arg8[%c0_15, %c0_16] : memref<1x10xf32, #tpu.memory_space<vmem>>, vector<1x10xf32>
    %18 = vector.broadcast %17 : vector<1x10xf32> to vector<16x10xf32>
    %19 = arith.addf %16, %18 : vector<16x10xf32>
    %c0_17 = arith.constant 0 : index
    %c0_18 = arith.constant 0 : index
    %20 = vector.load %arg1[%c0_17, %c0_18] : memref<16x1xf32, #tpu.memory_space<vmem>>, vector<16x1xf32>
    %21 = vector.broadcast %20 : vector<16x1xf32> to vector<16x10xf32>
    %22 = arith.mulf %19, %21 : vector<16x10xf32>
    %c0_19 = arith.constant 0 : index
    %c0_20 = arith.constant 0 : index
    %23 = vector.load %arg9[%c0_19, %c0_20] : memref<16x10xf32, #tpu.memory_space<vmem>>, vector<16x10xf32>
    tpu.vector_store %arg9[%c0_19, %c0_20], %22 {strides = array<i32>} : memref<16x10xf32, #tpu.memory_space<vmem>>, vector<16x10xf32>,
    %c0_21 = arith.constant 0 : index
    %c0_22 = arith.constant 0 : index
    %24 = vector.load %arg2[%c0_21, %c0_22] : memref<16x10xf32, #tpu.memory_space<vmem>>, vector<16x10xf32>
    %25 = arith.addf %22, %24 : vector<16x10xf32>
    %cst_23 = arith.constant dense<0xFF800000> : vector<16xf32>
    %26 = vector.multi_reduction <maximumf>, %25, %cst_23 [1] : vector<16x10xf32> to vector<16xf32>
    %27 = vector.shape_cast %26 : vector<16xf32> to vector<16x1xf32>
    %28 = tpu.iota {dimensions = array<i32: 1>} : vector<16x10xi32>
    %29 = vector.broadcast %27 : vector<16x1xf32> to vector<16x10xf32>
    %30 = arith.cmpf oeq, %25, %29 : vector<16x10xf32>
    %c10_i32 = arith.constant 10 : i32
    %31 = vector.broadcast %c10_i32 : i32 to vector<16x10xi32>
    %32 = arith.select %30, %28, %31 : vector<16x10xi1>, vector<16x10xi32>
    %cst_24 = arith.constant dense<2147483647> : vector<16xi32>
    %33 = vector.multi_reduction <minsi>, %32, %cst_24 [1] : vector<16x10xi32> to vector<16xi32>
    %34 = vector.shape_cast %33 : vector<16xi32> to vector<16x1xi32>
    %35 = arith.fptosi %20 : vector<16x1xf32> to vector<16x1xi32>
    %36 = arith.muli %34, %35 : vector<16x1xi32>
    %c0_25 = arith.constant 0 : index
    %c0_26 = arith.constant 0 : index
    %37 = vector.load %arg10[%c0_25, %c0_26] : memref<16x1xi32, #tpu.memory_space<vmem>>, vector<16x1xi32>
    tpu.vector_store %arg10[%c0_25, %c0_26], %36 {strides = array<i32>} : memref<16x1xi32, #tpu.memory_space<vmem>>, vector<16x1xi32>,
    return
  }
}

</mosaic_0001>

<llo_original>
// kernel: generator_forward.1
$region0: #{generator_forward.1}
  #allocation0 [shape = 'u32[]', space=smem, size = 0x4, offset = 0x4, fixed_abs, tag = 'smem constant byte address 0x4 - core index']
  #allocation1 [shape = 'u32[72,128]{1,0:T(1,128)}', space=vmem, size = 0x9000, scoped, tag = 'internal scratch']
  %s0 = inlined_call_operand.vmem [shape: f32[16,39], index: 0, kind: input, shape index: {}]
  %s1 = inlined_call_operand.vmem [shape: f32[16,1], index: 1, kind: input, shape index: {}]
  %s2 = inlined_call_operand.vmem [shape: f32[16,10], index: 2, kind: input, shape index: {}]
  %s3 = inlined_call_operand.vmem [shape: f32[39,32], index: 3, kind: input, shape index: {}]
  %s4 = inlined_call_operand.vmem [shape: f32[1,32], index: 4, kind: input, shape index: {}]
  %s5 = inlined_call_operand.vmem [shape: f32[32,32], index: 5, kind: input, shape index: {}]
  %s6 = inlined_call_operand.vmem [shape: f32[1,32], index: 6, kind: input, shape index: {}]
  %s7 = inlined_call_operand.vmem [shape: f32[32,10], index: 7, kind: input, shape index: {}]
  %s8 = inlined_call_operand.vmem [shape: f32[1,10], index: 8, kind: input, shape index: {}]
  %s9 = inlined_call_operand.hbm [shape: f32[16,10], index: 9, kind: output, shape index: {0}]
  %s10 = inlined_call_operand.vmem [shape: s32[16,1], index: 10, kind: output, shape index: {1}]
  %11 = xla_tuple %s9, %s10
  %s12 = sld [smem:[#allocation0]]
  $region54: #{generator_forward.1} parent=0
    _
  %s14 = ssub.s32 1, %s12
  %s15 = scalar_select 0, %s14, %s12
  $region1: #{generator_forward.1} parent=0
    #allocation2 [shape = 'u8[8192]{0}', space=vmem, size = 0x2000, scoped, tag = 'output window, operand 0, single buffered']
    #allocation3 [shape = 's32[1]{0}', space=sflag, size = 0x4, scoped, tag = 'scoped memory for generator_forward.1']
    %16 = vsyncpa [#allocation3], 0
    // Predicated region
    $region2: #{generator_forward.1} parent=1 // pred_check
      _
    $region3: #{generator_forward.1} parent=1 // pred_check_branch
      %18 = sbr.rel (0) target = $region5
    $region4: #{generator_forward.1} parent=1 // pred_region
      _
    $region5: #{generator_forward.1} parent=1 // pred_fallthru
      _
    // Predicated region
    $region6: #{generator_forward.1} parent=1 // pred_check
      _
    $region7: #{generator_forward.1} parent=1 // pred_check_branch
      %20 = sbr.rel (0) target = $region9
    $region8: #{generator_forward.1} parent=1 // pred_region
      _
    $region9: #{generator_forward.1} parent=1 // pred_fallthru
      _
    // Predicated region
    $region10: #{generator_forward.1} parent=1 // pred_check
      _
    $region11: #{generator_forward.1} parent=1 // pred_check_branch
      %22 = sbr.rel (0) target = $region13
    $region12: #{generator_forward.1} parent=1 // pred_region
      _
    $region13: #{generator_forward.1} parent=1 // pred_fallthru
      _
    // Predicated region
    $region14: #{generator_forward.1} parent=1 // pred_check
      _
    $region15: #{generator_forward.1} parent=1 // pred_check_branch
      %24 = sbr.rel (0) target = $region17
    $region16: #{generator_forward.1} parent=1 // pred_region
      _
    $region17: #{generator_forward.1} parent=1 // pred_fallthru
      _
    // Predicated region
    $region18: #{generator_forward.1} parent=1 // pred_check
      _
    $region19: #{generator_forward.1} parent=1 // pred_check_branch
      %26 = sbr.rel (0) target = $region21
    $region20: #{generator_forward.1} parent=1 // pred_region
      _
    $region21: #{generator_forward.1} parent=1 // pred_fallthru
      _
    // Predicated region
    $region22: #{generator_forward.1} parent=1 // pred_check
      _
    $region23: #{generator_forward.1} parent=1 // pred_check_branch
      %28 = sbr.rel (0) target = $region25
    $region24: #{generator_forward.1} parent=1 // pred_region
      _
    $region25: #{generator_forward.1} parent=1 // pred_fallthru
      _
    // Predicated region
    $region26: #{generator_forward.1} parent=1 // pred_check
      _
    $region27: #{generator_forward.1} parent=1 // pred_check_branch
      %30 = sbr.rel (0) target = $region29
    $region28: #{generator_forward.1} parent=1 // pred_region
      _
    $region29: #{generator_forward.1} parent=1 // pred_fallthru
      _
    // Predicated region
    $region30: #{generator_forward.1} parent=1 // pred_check
      _
    $region31: #{generator_forward.1} parent=1 // pred_check_branch
      %32 = sbr.rel (0) target = $region33
    $region32: #{generator_forward.1} parent=1 // pred_region
      _
    $region33: #{generator_forward.1} parent=1 // pred_fallthru
      _
    // Predicated region
    $region34: #{generator_forward.1} parent=1 // pred_check
      _
    $region35: #{generator_forward.1} parent=1 // pred_check_branch
      %34 = sbr.rel (0) target = $region37
    $region36: #{generator_forward.1} parent=1 // pred_region
      _
    $region37: #{generator_forward.1} parent=1 // pred_fallthru
      _
    %v35 = vld [vmem:[%s0] sm:$0xff]
    %v36 = vld [vmem:[%s0 + $0x8] sm:$0xff]
    %v37 = vld [vmem:[%s3] sm:$0xff]
    %v38 = vld [vmem:[%s3 + $0x8] sm:$0xff]
    %v39 = vld [vmem:[%s3 + $0x10] sm:$0xff]
    %v40 = vld [vmem:[%s3 + $0x18] sm:$0xff]
    %v41 = vld [vmem:[%s3 + $0x20] sm:$0x7f]
    %v42 = vld [vmem:[%s4] sm:$0x1]
    %v44 = vperm.slane %v42, 0
    %vm46 = vcmask 318464
    %v48 = vsel %vm46, %v35, 0
    %v51 = vsel %vm46, %v36, 0
    %vm53 = vcmask 1046528
    %v55 = vsel %vm53, %v41, 0
    %57 = vmatpush.msra.mxu0 0.0
    %58 = vmatpush.msra.mxu0 0.0
    %59 = vmatpush.msra.mxu0 0.0
    %60 = vmatpush.msra.mxu0 0.0
    %61 = vmatpush.msra.mxu0 0.0
    %62 = vmatpush.msra.mxu0 0.0
    %63 = vmatpush.msra.mxu0 0.0
    %64 = vmatpush.msra.mxu0 0.0
    %65 = vmatpush.msra.mxu0 0.0
    %66 = vmatpush.msra.mxu0 0.0
    %67 = vmatpush.msra.mxu0 0.0
    %68 = vmatpush.msra.mxu0 %v55
    %69 = vmatpush.msra.mxu0 %v40
    %70 = vmatpush.msra.mxu0 %v39
    %71 = vmatpush.msra.mxu0 %v38
    %72 = vmatpush.msra.mxu0 %v37
    %73 = vmatmul.f32.gmra.mxu0 %v48
    %v74 = vpop.f32.mrf.mxu0
    %v75 = vadd.f32 %v44, %v74
    %76 = vmatmul.f32.gmra.mxu0 %v51
    %v77 = vpop.f32.mrf.mxu0
    %v78 = vadd.f32 %v44, %v77
    %79 = vdwg.mxu0
    %v80 = vmax.f32 %v75, 0.0
    %v81 = vmax.f32 %v78, 0.0
    %v82 = vld [vmem:[%s5] sm:$0xff]
    %v83 = vld [vmem:[%s5 + $0x8] sm:$0xff]
    %v84 = vld [vmem:[%s5 + $0x10] sm:$0xff]
    %v85 = vld [vmem:[%s5 + $0x18] sm:$0xff]
    %v86 = vld [vmem:[%s6] sm:$0x1]
    %v88 = vperm.slane %v86, 0
    %vm90 = vcmask 261120
    %v92 = vsel %vm90, %v80, 0
    %v95 = vsel %vm90, %v81, 0
    %97 = vmatpush.msra.mxu0 0.0
    %98 = vmatpush.msra.mxu0 0.0
    %99 = vmatpush.msra.mxu0 0.0
    %100 = vmatpush.msra.mxu0 0.0
    %101 = vmatpush.msra.mxu0 0.0
    %102 = vmatpush.msra.mxu0 0.0
    %103 = vmatpush.msra.mxu0 0.0
    %104 = vmatpush.msra.mxu0 0.0
    %105 = vmatpush.msra.mxu0 0.0
    %106 = vmatpush.msra.mxu0 0.0
    %107 = vmatpush.msra.mxu0 0.0
    %108 = vmatpush.msra.mxu0 0.0
    %109 = vmatpush.msra.mxu0 %v85
    %110 = vmatpush.msra.mxu0 %v84
    %111 = vmatpush.msra.mxu0 %v83
    %112 = vmatpush.msra.mxu0 %v82
    %113 = vmatmul.f32.gmra.mxu0 %v92
    %v114 = vpop.f32.mrf.mxu0
    %v115 = vadd.f32 %v88, %v114
    %116 = vmatmul.f32.gmra.mxu0 %v95
    %v117 = vpop.f32.mrf.mxu0
    %v118 = vadd.f32 %v88, %v117
    %119 = vdwg.mxu0
    %v120 = vmax.f32 %v115, 0.0
    %v121 = vmax.f32 %v118, 0.0
    %v122 = vld [vmem:[%s7] sm:$0xff]
    %v123 = vld [vmem:[%s7 + $0x8] sm:$0xff]
    %v124 = vld [vmem:[%s7 + $0x10] sm:$0xff]
    %v125 = vld [vmem:[%s7 + $0x18] sm:$0xff]
    %v126 = vld [vmem:[%s8] sm:$0x1]
    %v128 = vperm.slane %v126, 0
    %v131 = vsel %vm90, %v120, 0
    %v134 = vsel %vm90, %v121, 0
    %136 = vmatpush.msra.mxu0 0.0
    %137 = vmatpush.msra.mxu0 0.0
    %138 = vmatpush.msra.mxu0 0.0
    %139 = vmatpush.msra.mxu0 0.0
    %140 = vmatpush.msra.mxu0 0.0
    %141 = vmatpush.msra.mxu0 0.0
    %142 = vmatpush.msra.mxu0 0.0
    %143 = vmatpush.msra.mxu0 0.0
    %144 = vmatpush.msra.mxu0 0.0
    %145 = vmatpush.msra.mxu0 0.0
    %146 = vmatpush.msra.mxu0 0.0
    %147 = vmatpush.msra.mxu0 0.0
    %148 = vmatpush.msra.mxu0 %v125
    %149 = vmatpush.msra.mxu0 %v124
    %150 = vmatpush.msra.mxu0 %v123
    %151 = vmatpush.msra.mxu0 %v122
    %152 = vmatmul.f32.gmra.mxu0 %v131
    %v153 = vpop.f32.mrf.mxu0
    %v154 = vadd.f32 %v128, %v153
    %155 = vmatmul.f32.gmra.mxu0 %v134
    %v156 = vpop.f32.mrf.mxu0
    %v157 = vadd.f32 %v128, %v156
    %158 = vdwg.mxu0
    %v159 = vld [vmem:[%s1] sm:$0xff]
    %v160 = vld [vmem:[%s1 + $0x8] sm:$0xff]
    %162 = vset.pattern.permute.xlu0 0
    %163 = vperm.xlu0 %162, %v159
    %v164 = vpop.permute.xlu0 %163
    %167 = vset.pattern.permute.xlu0 0
    %168 = vperm.xlu0 %167, %v160
    %v169 = vpop.permute.xlu0 %168
    %v171 = vmul.f32 %v154, %v164
    %v172 = vmul.f32 %v157, %v169
    %vm173 = vcmask 80896
    %174 = vst.msk [vmem:[#allocation2] sm:$0xff] %vm173, %v171
    %175 = vst.msk [vmem:[#allocation2 + $0x8] sm:$0xff] %vm173, %v172
    %v176 = vld [vmem:[%s2] sm:$0xff]
    %v177 = vld [vmem:[%s2 + $0x8] sm:$0xff]
    %v178 = vadd.f32 %v171, %v176
    %v179 = vadd.f32 %v172, %v177
    %v180 = vsel %vm173, %v178, -inf
    %181 = vmax.xlane.f32.xlu0 %v180
    %v182 = vpop.xlane.xlu0 %181
    %v183 = vsel %vm173, %v179, -inf
    %184 = vmax.xlane.f32.xlu0 %v183
    %v185 = vpop.xlane.xlu0 %184
    %v186 = vlaneseq
    %v187 = vand.u32 %v186, 127
    %vm188 = vcmp.eq.f32.partialorder %v178, %v182
    %vm189 = vcmp.eq.f32.partialorder %v179, %v185
    %v190 = vsel %vm188, %v187, 10
    %v191 = vsel %vm189, %v187, 10
    %v192 = vsel %vm173, %v190, 2147483647
    %v193 = vand.u32 %v192, 65535
    %v194 = vshra.s32 %v192, 16
    %v195 = vcvt.s32.f32 %v193
    %v196 = vcvt.s32.f32 %v194
    %197 = vmin.xlane.f32.xlu0 %v196
    %v198 = vpop.xlane.xlu0 %197
    %vm199 = vcmp.eq.f32.partialorder %v196, %v198
    %v200 = vsel %vm199, %v195, inf
    %201 = vmin.xlane.f32.xlu0 %v200
    %v202 = vpop.xlane.xlu0 %201
    %v203 = vcvt.f32.s32 %v202
    %v204 = vcvt.f32.s32 %v198
    %v205 = vshll.u32 %v204, 16
    %v206 = vadd.s32 %v205, %v203
    %v207 = vsel %vm173, %v191, 2147483647
    %v208 = vand.u32 %v207, 65535
    %v209 = vshra.s32 %v207, 16
    %v210 = vcvt.s32.f32 %v208
    %v211 = vcvt.s32.f32 %v209
    %212 = vmin.xlane.f32.xlu0 %v211
    %v213 = vpop.xlane.xlu0 %212
    %vm214 = vcmp.eq.f32.partialorder %v211, %v213
    %v215 = vsel %vm214, %v210, inf
    %216 = vmin.xlane.f32.xlu0 %v215
    %v217 = vpop.xlane.xlu0 %216
    %v218 = vcvt.f32.s32 %v217
    %v219 = vcvt.f32.s32 %v213
    %v220 = vshll.u32 %v219, 16
    %v221 = vadd.s32 %v220, %v218
    %v222 = vcvt.f32.s32.to.zero.pseudo %v159
    %v223 = vcvt.f32.s32.to.zero.pseudo %v160
    %v224 = vmul.u32 %v206, %v222
    %v225 = vmul.u32 %v221, %v223
    %vm226 = vcmask 7168
    %227 = vst.msk [vmem:[%s10] sm:$0xff] %vm226, %v224
    %228 = vst.msk [vmem:[%s10 + $0x8] sm:$0xff] %vm226, %v225
    // Predicated region
    $region38: #{generator_forward.1} parent=1 // pred_check
      _
    $region39: #{generator_forward.1} parent=1 // pred_check_branch
      %230 = sbr.rel (0) target = $region41
    $region40: #{generator_forward.1} parent=1 // pred_region
      %232 = vsyncadd [#allocation3], 0
      %s233 = sshll.u32 [#allocation2], 4
      %s234 = int_to_ptr.vmem [resolvable:$true] %s233
      %s235 = sshll.u32 %s9, 4
      %s236 = int_to_ptr.hbm [resolvable:$true] %s235
      %241 = dma.vmem_to_hbm [thread:$0]  %s234, 256, %s236, [#allocation3], 128, 128, 8
    $region41: #{generator_forward.1} parent=1 // pred_fallthru
      _
    // Predicated region
    $region42: #{generator_forward.1} parent=1 // pred_check
      _
    $region43: #{generator_forward.1} parent=1 // pred_check_branch
      %243 = sbr.rel (0) target = $region45
    $region44: #{generator_forward.1} parent=1 // pred_region
      _
    $region45: #{generator_forward.1} parent=1 // pred_fallthru
      _
    // Predicated region
    $region46: #{generator_forward.1} parent=1 // pred_check
      _
    $region47: #{generator_forward.1} parent=1 // pred_check_branch
      %245 = sbr.rel (0) target = $region49
    $region48: #{generator_forward.1} parent=1 // pred_region
      %247 = dma.done [#allocation3], 256
    $region49: #{generator_forward.1} parent=1 // pred_fallthru
      _
    // Predicated region
    $region50: #{generator_forward.1} parent=1 // pred_check
      _
    $region51: #{generator_forward.1} parent=1 // pred_check_branch
      %249 = sbr.rel (0) target = $region53
    $region52: #{generator_forward.1} parent=1 // pred_region
      _
    $region53: #{generator_forward.1} parent=1 // pred_fallthru
      _
    %250 = vsyncpa [#allocation3], 1

</llo_original>
